<compile_context>
chip_gen: v7x
topology: tpu7x:2x2x1
jax: 0.10.0
libtpu: 0.0.40
codegen_flags: <defaults>
</compile_context>

<pallas_src>
import functools

import jax
import jax.numpy as jnp
from jax import lax
from jax.experimental import pallas as pl
from jax.experimental.pallas import tpu as pltpu


# Contract the feature axis (dim 1) of both operands directly on the MXU
# (no RHS transpose / relayout).
_DIMS_FEAT = (((1,), (1,)), ((), ()))


# ----------------------------------------------------------------------------
# Shared in-kernel helpers
# ----------------------------------------------------------------------------
def _row_sq_norms(x_f32):
    """(1, T) row-form squared norms via an MXU ones-row contraction.

    Avoids a (T,1)->(1,T) cross-lane transpose; the MXU has plenty of slack.
    """
    ones_row = jnp.ones((1, x_f32.shape[1]), jnp.float32)
    return lax.dot_general(ones_row, x_f32 * x_f32, _DIMS_FEAT,
                           preferred_element_type=jnp.float32)


def _pairwise_sq_dists(row, row_sq_col, col, col_sq_row):
    """||r_a - c_b||^2 for a row tile vs a col tile, clamped at 0."""
    g = lax.dot_general(row, col, _DIMS_FEAT, preferred_element_type=jnp.float32)
    return jnp.maximum(row_sq_col + col_sq_row - 2.0 * g, 0.0)


def _ladder_poly(l2, neg_inv_bw_ref, kernel_mul, kernel_num):
    """Elementwise sum_k exp(l2 * (-1/bw_k)) with NO reduction.

    kernel_mul == 2.0: squaring ladder -> one EUP exp per quadrant, the
    remaining bandwidths are VALU squarings (hidden under the exp pass).
    Generic kernel_mul: exp per bandwidth, accumulated elementwise so the
    caller still only performs one cross-lane reduction.
    """
    if float(kernel_mul) == 2.0:
        e = jnp.exp(l2 * neg_inv_bw_ref[kernel_num - 1])   # largest bandwidth
        p = e
        for _ in range(kernel_num - 1):
            e = e * e
            p = p + e
        return p
    p = jnp.exp(l2 * neg_inv_bw_ref[0])
    for k in range(1, kernel_num):
        p = p + jnp.exp(l2 * neg_inv_bw_ref[k])
    return p


# ----------------------------------------------------------------------------
# RBF (gaussian multi-kernel) MMD — single-block kernel (moderate B)
# ----------------------------------------------------------------------------
def _mmd_rbf_single_block_kernel(neg_inv_bw_ref, src_ref, tgt_ref, out_ref, *,
                                 batch_size, kernel_mul, kernel_num):
    src = src_ref[...]                                       # (B, Dp), native dtype
    tgt = tgt_ref[...]
    src_f = src.astype(jnp.float32)
    tgt_f = tgt.astype(jnp.float32)

    sq_s_col = jnp.sum(src_f * src_f, axis=1, keepdims=True)   # (B, 1)
    sq_t_col = jnp.sum(tgt_f * tgt_f, axis=1, keepdims=True)
    sq_s_row = _row_sq_norms(src_f)                             # (1, B) via MXU
    sq_t_row = _row_sq_norms(tgt_f)

    l2_ss = _pairwise_sq_dists(src, sq_s_col, src, sq_s_row)
    l2_tt = _pairwise_sq_dists(tgt, sq_t_col, tgt, sq_t_row)
    l2_st = _pairwise_sq_dists(src, sq_s_col, tgt, sq_t_row)

    # loss * B^2 = sum K(S,S) + sum K(T,T) - 2 * sum K(S,T)
    # Fuse the three quadrant polynomials elementwise -> single XLU reduction.
    p = (_ladder_poly(l2_ss, neg_inv_bw_ref, kernel_mul, kernel_num)
         + _ladder_poly(l2_tt, neg_inv_bw_ref, kernel_mul, kernel_num)
         - 2.0 * _ladder_poly(l2_st, neg_inv_bw_ref, kernel_mul, kernel_num))
    out_ref[0] = jnp.sum(p) / jnp.float32(batch_size * batch_size)


# ----------------------------------------------------------------------------
# RBF MMD — tiled grid kernel (large B)
# ----------------------------------------------------------------------------
def _mmd_rbf_tiled_kernel(neg_inv_bw_ref, src_i_ref, tgt_i_ref, src_j_ref,
                          tgt_j_ref, out_ref, *, kernel_mul, kernel_num):
    i = pl.program_id(0)          # row-tile axis ("parallel")
    j = pl.program_id(1)          # col-tile / reduction axis ("arbitrary", last)

    @pl.when(j == 0)
    def _init():
        out_ref[...] = jnp.zeros_like(out_ref)

    src_i = src_i_ref[...]
    tgt_j = tgt_j_ref[...]
    src_i_f = src_i.astype(jnp.float32)
    tgt_j_f = tgt_j.astype(jnp.float32)
    sq_s_i = jnp.sum(src_i_f * src_i_f, axis=1, keepdims=True)   # (T, 1)
    sq_t_j = _row_sq_norms(tgt_j_f)                              # (1, T)

    # Cross (source, target) quadrant: needed for every (i, j). Its transpose
    # (the YX quadrant) has the same sum, hence the -2 coefficient.
    l2_st = _pairwise_sq_dists(src_i, sq_s_i, tgt_j, sq_t_j)
    p_st = _ladder_poly(l2_st, neg_inv_bw_ref, kernel_mul, kernel_num)
    out_ref[...] = out_ref[...] - 2.0 * jnp.sum(p_st)

    # Source-source / target-target quadrants are symmetric in (i, j): compute
    # only the upper triangle of tiles and double the off-diagonal ones.
    @pl.when(j >= i)
    def _symmetric():
        src_j = src_j_ref[...]
        tgt_i = tgt_i_ref[...]
        src_j_f = src_j.astype(jnp.float32)
        tgt_i_f = tgt_i.astype(jnp.float32)
        sq_s_j = _row_sq_norms(src_j_f)                          # (1, T)
        sq_t_i = jnp.sum(tgt_i_f * tgt_i_f, axis=1, keepdims=True)

        l2_ss = _pairwise_sq_dists(src_i, sq_s_i, src_j, sq_s_j)
        l2_tt = _pairwise_sq_dists(tgt_i, sq_t_i, tgt_j, sq_t_j)
        p = (_ladder_poly(l2_ss, neg_inv_bw_ref, kernel_mul, kernel_num)
             + _ladder_poly(l2_tt, neg_inv_bw_ref, kernel_mul, kernel_num))
        w = jnp.where(j > i, jnp.float32(2.0), jnp.float32(1.0))
        out_ref[...] = out_ref[...] + w * jnp.sum(p)


# ----------------------------------------------------------------------------
# Linear MMD kernel (linear_mmd2 branch of the PyTorch module)
# ----------------------------------------------------------------------------
def _mmd_linear_kernel(src_ref, tgt_ref, out_ref):
    src = src_ref[...].astype(jnp.float32)
    tgt = tgt_ref[...].astype(jnp.float32)
    # Keep intermediates 2-D: (1, D) row stays a clean sublane-0 layout.
    delta = (jnp.mean(src, axis=0, keepdims=True)
             - jnp.mean(tgt, axis=0, keepdims=True))
    out_ref[0] = jnp.sum(delta * delta)


# ----------------------------------------------------------------------------
# Wrapper helpers
# ----------------------------------------------------------------------------
def _pad_features(x, multiple=128):
    """Zero-pad the feature dim to a lane-dense multiple (Gram/norm neutral)."""
    d = x.shape[1]
    d_pad = ((d + multiple - 1) // multiple) * multiple
    if d_pad == d:
        return x
    return jnp.pad(x, ((0, 0), (0, d_pad - d)))


# ----------------------------------------------------------------------------
# Python wrapper mirroring MMD_loss.forward
# ----------------------------------------------------------------------------
def mmd_loss(source, target, *, kernel_type="rbf", kernel_mul=2.0,
             kernel_num=5, fix_sigma=None, tile_b=None, max_single_block_b=512):
    """MMD loss between source (B, D) and target (B, D). Returns a scalar."""
    b, d = source.shape
    assert target.shape == (b, d)
    itemsize = jnp.dtype(source.dtype).itemsize

    if kernel_type == "linear":
        src_p = _pad_features(source)
        tgt_p = _pad_features(target)
        d_pad = src_p.shape[1]
        out = pl.pallas_call(
            _mmd_linear_kernel,
            out_shape=jax.ShapeDtypeStruct((1,), jnp.float32),
            in_specs=[
                pl.BlockSpec((b, d_pad), lambda: (0, 0)),
                pl.BlockSpec((b, d_pad), lambda: (0, 0)),
            ],
            out_specs=pl.BlockSpec(memory_space=pltpu.MemorySpace.SMEM),
        )(src_p, tgt_p)
        return out[0]

    if kernel_type != "rbf":
        raise ValueError(f"unknown kernel_type: {kernel_type}")

    n = 2 * b

    # Center the data with the joint mean (exact for RBF MMD: it depends only
    # on pairwise differences).  Fixes the f32 cancellation in the analytic
    # bandwidth and in sq_i + sq_j - 2*g_ij inside the kernels.
    src_f = source.astype(jnp.float32)
    tgt_f = target.astype(jnp.float32)
    mean = (jnp.sum(src_f, axis=0, keepdims=True)
            + jnp.sum(tgt_f, axis=0, keepdims=True)) / jnp.float32(n)
    src_c = (src_f - mean).astype(source.dtype)
    tgt_c = (tgt_f - mean).astype(target.dtype)

    # Analytic bandwidth (O(N*D) in plain JAX):
    #   sum_{i,j} ||x_i - x_j||^2 = 2N * sum_i ||x_i||^2 - 2 * ||sum_i x_i||^2
    if fix_sigma is not None:
        bandwidth = jnp.float32(fix_sigma)
    else:
        sc = src_c.astype(jnp.float32)
        tc = tgt_c.astype(jnp.float32)
        sum_sq = jnp.sum(sc * sc) + jnp.sum(tc * tc)
        sum_vec = jnp.sum(sc, axis=0) + jnp.sum(tc, axis=0)
        sum_l2 = 2.0 * n * sum_sq - 2.0 * jnp.sum(sum_vec * sum_vec)
        bandwidth = sum_l2 / jnp.float32(n * n - n)
    bandwidth = bandwidth / jnp.float32(kernel_mul ** (kernel_num // 2))
    bw_ladder = bandwidth * (jnp.float32(kernel_mul)
                             ** jnp.arange(kernel_num, dtype=jnp.float32))
    neg_inv_bw = (-1.0 / bw_ladder).astype(jnp.float32)        # (kernel_num,)

    # Lane-dense feature padding (zeros are Gram/norm neutral).
    src_p = _pad_features(src_c)
    tgt_p = _pad_features(tgt_c)
    d_pad = src_p.shape[1]

    n_exp = 1 if float(kernel_mul) == 2.0 else kernel_num

    # Choose single-block vs tiled path.
    t = None
    if tile_b is not None:
        assert b % tile_b == 0 and tile_b % 8 == 0
        t = int(tile_b)
    elif b > max_single_block_b:
        for cand in (256, 128):
            if b % cand == 0:
                t = cand
                break
    # TODO(synk): batches larger than max_single_block_b that are not a
    # multiple of 128 fall back to the single-block kernel; add masked edge
    # tiles to the tiled path instead.

    if t is None:
        # ---- single-block kernel (small / moderate B) ----
        vmem_est = 8 * b * b * 4 + 4 * b * d_pad * itemsize + (1 << 20)
        cparams = None
        if vmem_est > 30 * (1 << 20):
            cparams = pltpu.CompilerParams(
                vmem_limit_bytes=int(min(vmem_est * 1.5, 100 * (1 << 20))))
        kern = functools.partial(
            _mmd_rbf_single_block_kernel,
            batch_size=b, kernel_mul=kernel_mul, kernel_num=kernel_num)
        out = pl.pallas_call(
            kern,
            out_shape=jax.ShapeDtypeStruct((1,), jnp.float32),
            in_specs=[
                pl.BlockSpec(memory_space=pltpu.MemorySpace.SMEM),  # -1/bw ladder
                pl.BlockSpec((b, d_pad), lambda: (0, 0)),           # source
                pl.BlockSpec((b, d_pad), lambda: (0, 0)),           # target
            ],
            out_specs=pl.BlockSpec(memory_space=pltpu.MemorySpace.SMEM),
            cost_estimate=pl.CostEstimate(
                flops=int(6 * b * b * d_pad),
                transcendentals=int(3 * n_exp * b * b),
                bytes_accessed=int(2 * b * d_pad * itemsize + 4)),
            compiler_params=cparams,
        )(neg_inv_bw, src_p, tgt_p)
        return out[0]

    # ---- tiled grid kernel (large B) ----
    nt = b // t
    kern = functools.partial(_mmd_rbf_tiled_kernel,
                             kernel_mul=kernel_mul, kernel_num=kernel_num)
    partials = pl.pallas_call(
        kern,
        out_shape=jax.ShapeDtypeStruct((nt, 1, 128), jnp.float32),
        grid=(nt, nt),
        in_specs=[
            pl.BlockSpec(memory_space=pltpu.MemorySpace.SMEM),      # -1/bw ladder
            pl.BlockSpec((t, d_pad), lambda i, j: (i, 0)),          # source row tile
            pl.BlockSpec((t, d_pad), lambda i, j: (i, 0)),          # target row tile
            pl.BlockSpec((t, d_pad), lambda i, j: (j, 0)),          # source col tile
            pl.BlockSpec((t, d_pad), lambda i, j: (j, 0)),          # target col tile
        ],
        out_specs=pl.BlockSpec((1, 1, 128), lambda i, j: (i, 0, 0)),
        cost_estimate=pl.CostEstimate(
            flops=int(6 * b * b * d_pad),
            transcendentals=int(3 * n_exp * b * b),
            bytes_accessed=int(4 * nt * b * d_pad * itemsize)),
        compiler_params=pltpu.CompilerParams(
            dimension_semantics=("parallel", "arbitrary")),
    )(neg_inv_bw, src_p, tgt_p, src_p, tgt_p)
    # All 128 lanes of each per-row-tile partial hold the same value.
    return jnp.sum(partials[:, 0, 0]) / jnp.float32(b * b)


# ----------------------------------------------------------------------------
# Pure-JAX references mirroring the PyTorch module (for validation only)
# ----------------------------------------------------------------------------
def _mmd_rbf_reference(source, target, kernel_mul=2.0, kernel_num=5,
                       fix_sigma=None):
    src = source.astype(jnp.float32)
    tgt = target.astype(jnp.float32)
    b = src.shape[0]
    total = jnp.concatenate([src, tgt], axis=0)
    n = total.shape[0]
    diff = total[None, :, :] - total[:, None, :]
    l2 = jnp.sum(diff * diff, axis=2)
    if fix_sigma is not None:
        bandwidth = jnp.float32(fix_sigma)
    else:
        bandwidth = jnp.sum(l2) / (n * n - n)
    bandwidth = bandwidth / (kernel_mul ** (kernel_num // 2))
    kernels = sum(jnp.exp(-l2 / (bandwidth * (kernel_mul ** k)))
                  for k in range(kernel_num))
    xx = jnp.mean(kernels[:b, :b])
    yy = jnp.mean(kernels[b:, b:])
    xy = jnp.mean(kernels[:b, b:])
    yx = jnp.mean(kernels[b:, :b])
    return xx + yy - xy - yx


def _mmd_linear_reference(source, target):
    delta = (jnp.mean(source.astype(jnp.float32), axis=0)
             - jnp.mean(target.astype(jnp.float32), axis=0))
    return jnp.sum(delta * delta)


if __name__ == "__main__":
    key = jax.random.PRNGKey(0)
    k1, k2, k3, k4 = jax.random.split(key, 4)

    # Small feature batches, as implied by the module's forward.
    B, D = 8, 32
    source = jax.random.normal(k1, (B, D), dtype=jnp.float32)
    target = jax.random.normal(k2, (B, D), dtype=jnp.float32) + 0.5

    # Default config: kernel_type='rbf', kernel_mul=2.0, kernel_num=5.
    loss_rbf = mmd_loss(source, target, kernel_type="rbf",
                        kernel_mul=2.0, kernel_num=5)
    loss_lin = mmd_loss(source, target, kernel_type="linear")
    jax.block_until_ready((loss_rbf, loss_lin))

    ref_rbf = _mmd_rbf_reference(source, target)
    ref_lin = _mmd_linear_reference(source, target)
    assert jnp.allclose(loss_rbf, ref_rbf, rtol=2e-2, atol=2e-3), (loss_rbf, ref_rbf)
    assert jnp.allclose(loss_lin, ref_lin, rtol=2e-2, atol=2e-3), (loss_lin, ref_lin)

    # Exercise the tiled-grid path (parallel row-tile axis, symmetric SS/TT
    # tile skip, per-row-tile partials) with a 2x2 grid.
    B2, D2 = 256, 32
    source2 = jax.random.normal(k3, (B2, D2), dtype=jnp.float32)
    target2 = jax.random.normal(k4, (B2, D2), dtype=jnp.float32) + 0.25
    loss_tiled = mmd_loss(source2, target2, kernel_type="rbf",
                          kernel_mul=2.0, kernel_num=5, tile_b=128)
    jax.block_until_ready(loss_tiled)
    ref_tiled = _mmd_rbf_reference(source2, target2)
    assert jnp.allclose(loss_tiled, ref_tiled, rtol=2e-2, atol=2e-3), (
        loss_tiled, ref_tiled)

    print("KERNEL_OK")
</pallas_src>

<mosaic_0001>
module attributes {stable_mosaic.version = 11 : i64} {
  func.func @_mmd_rbf_single_block_kernel(%arg0: memref<5xf32, #tpu.memory_space<smem>>, %arg1: memref<8x128xf32, #tpu.memory_space<vmem>>, %arg2: memref<8x128xf32, #tpu.memory_space<vmem>>, %arg3: memref<1xf32, #tpu.memory_space<smem>>) attributes {dimension_semantics = [], scalar_prefetch = 0 : i64, scratch_operands = 0 : i64, tpu.core_type = #tpu.core_type<tc>} {
    %c0 = arith.constant 0 : index
    %c0_0 = arith.constant 0 : index
    %0 = vector.load %arg1[%c0, %c0_0] : memref<8x128xf32, #tpu.memory_space<vmem>>, vector<8x128xf32>
    %c0_1 = arith.constant 0 : index
    %c0_2 = arith.constant 0 : index
    %1 = vector.load %arg2[%c0_1, %c0_2] : memref<8x128xf32, #tpu.memory_space<vmem>>, vector<8x128xf32>
    %2 = arith.mulf %0, %0 : vector<8x128xf32>
    %cst = arith.constant dense<0.000000e+00> : vector<8xf32>
    %3 = vector.multi_reduction <add>, %2, %cst [1] : vector<8x128xf32> to vector<8xf32>
    %4 = vector.shape_cast %3 : vector<8xf32> to vector<8x1xf32>
    %5 = arith.mulf %1, %1 : vector<8x128xf32>
    %cst_3 = arith.constant dense<0.000000e+00> : vector<8xf32>
    %6 = vector.multi_reduction <add>, %5, %cst_3 [1] : vector<8x128xf32> to vector<8xf32>
    %7 = vector.shape_cast %6 : vector<8xf32> to vector<8x1xf32>
    %cst_4 = arith.constant 1.000000e+00 : f32
    %8 = vector.broadcast %cst_4 : f32 to vector<1x128xf32>
    %9 = arith.mulf %0, %0 : vector<8x128xf32>
    %cst_5 = arith.constant dense<0.000000e+00> : vector<1x8xf32>
    %10 = tpu.matmul %8, %9, %cst_5 {dimension_numbers = #tpu.dot_dimension_numbers<[1], [1], [0], [0], [0, 0, 1, 0], [], []>} : vector<1x128xf32>, vector<8x128xf32>, vector<1x8xf32> -> vector<1x8xf32>
    %cst_6 = arith.constant 1.000000e+00 : f32
    %11 = vector.broadcast %cst_6 : f32 to vector<1x128xf32>
    %12 = arith.mulf %1, %1 : vector<8x128xf32>
    %cst_7 = arith.constant dense<0.000000e+00> : vector<1x8xf32>
    %13 = tpu.matmul %11, %12, %cst_7 {dimension_numbers = #tpu.dot_dimension_numbers<[1], [1], [0], [0], [0, 0, 1, 0], [], []>} : vector<1x128xf32>, vector<8x128xf32>, vector<1x8xf32> -> vector<1x8xf32>
    %cst_8 = arith.constant dense<0.000000e+00> : vector<8x8xf32>
    %14 = tpu.matmul %0, %0, %cst_8 {dimension_numbers = #tpu.dot_dimension_numbers<[1], [1], [0], [0], [0, 0, 1, 0], [], []>} : vector<8x128xf32>, vector<8x128xf32>, vector<8x8xf32> -> vector<8x8xf32>
    %15 = vector.broadcast %4 : vector<8x1xf32> to vector<8x8xf32>
    %16 = vector.broadcast %10 : vector<1x8xf32> to vector<8x8xf32>
    %17 = arith.addf %15, %16 : vector<8x8xf32>
    %cst_9 = arith.constant 2.000000e+00 : f32
    %18 = vector.broadcast %cst_9 : f32 to vector<8x8xf32>
    %19 = arith.mulf %18, %14 : vector<8x8xf32>
    %20 = arith.subf %17, %19 : vector<8x8xf32>
    %cst_10 = arith.constant 0.000000e+00 : f32
    %21 = vector.broadcast %cst_10 : f32 to vector<8x8xf32>
    %22 = arith.maximumf %20, %21 : vector<8x8xf32>
    %cst_11 = arith.constant dense<0.000000e+00> : vector<8x8xf32>
    %23 = tpu.matmul %1, %1, %cst_11 {dimension_numbers = #tpu.dot_dimension_numbers<[1], [1], [0], [0], [0, 0, 1, 0], [], []>} : vector<8x128xf32>, vector<8x128xf32>, vector<8x8xf32> -> vector<8x8xf32>
    %24 = vector.broadcast %7 : vector<8x1xf32> to vector<8x8xf32>
    %25 = vector.broadcast %13 : vector<1x8xf32> to vector<8x8xf32>
    %26 = arith.addf %24, %25 : vector<8x8xf32>
    %cst_12 = arith.constant 2.000000e+00 : f32
    %27 = vector.broadcast %cst_12 : f32 to vector<8x8xf32>
    %28 = arith.mulf %27, %23 : vector<8x8xf32>
    %29 = arith.subf %26, %28 : vector<8x8xf32>
    %cst_13 = arith.constant 0.000000e+00 : f32
    %30 = vector.broadcast %cst_13 : f32 to vector<8x8xf32>
    %31 = arith.maximumf %29, %30 : vector<8x8xf32>
    %cst_14 = arith.constant dense<0.000000e+00> : vector<8x8xf32>
    %32 = tpu.matmul %0, %1, %cst_14 {dimension_numbers = #tpu.dot_dimension_numbers<[1], [1], [0], [0], [0, 0, 1, 0], [], []>} : vector<8x128xf32>, vector<8x128xf32>, vector<8x8xf32> -> vector<8x8xf32>
    %33 = vector.broadcast %4 : vector<8x1xf32> to vector<8x8xf32>
    %34 = vector.broadcast %13 : vector<1x8xf32> to vector<8x8xf32>
    %35 = arith.addf %33, %34 : vector<8x8xf32>
    %cst_15 = arith.constant 2.000000e+00 : f32
    %36 = vector.broadcast %cst_15 : f32 to vector<8x8xf32>
    %37 = arith.mulf %36, %32 : vector<8x8xf32>
    %38 = arith.subf %35, %37 : vector<8x8xf32>
    %cst_16 = arith.constant 0.000000e+00 : f32
    %39 = vector.broadcast %cst_16 : f32 to vector<8x8xf32>
    %40 = arith.maximumf %38, %39 : vector<8x8xf32>
    %c4 = arith.constant 4 : index
    %41 = memref.load %arg0[%c4] : memref<5xf32, #tpu.memory_space<smem>>
    %42 = vector.broadcast %41 : f32 to vector<8x8xf32>
    %43 = arith.mulf %22, %42 : vector<8x8xf32>
    %44 = math.exp %43 : vector<8x8xf32>
    %45 = arith.mulf %44, %44 : vector<8x8xf32>
    %46 = arith.addf %44, %45 : vector<8x8xf32>
    %47 = arith.mulf %45, %45 : vector<8x8xf32>
    %48 = arith.addf %46, %47 : vector<8x8xf32>
    %49 = arith.mulf %47, %47 : vector<8x8xf32>
    %50 = arith.addf %48, %49 : vector<8x8xf32>
    %51 = arith.mulf %49, %49 : vector<8x8xf32>
    %52 = arith.addf %50, %51 : vector<8x8xf32>
    %c4_17 = arith.constant 4 : index
    %53 = memref.load %arg0[%c4_17] : memref<5xf32, #tpu.memory_space<smem>>
    %54 = vector.broadcast %53 : f32 to vector<8x8xf32>
    %55 = arith.mulf %31, %54 : vector<8x8xf32>
    %56 = math.exp %55 : vector<8x8xf32>
    %57 = arith.mulf %56, %56 : vector<8x8xf32>
    %58 = arith.addf %56, %57 : vector<8x8xf32>
    %59 = arith.mulf %57, %57 : vector<8x8xf32>
    %60 = arith.addf %58, %59 : vector<8x8xf32>
    %61 = arith.mulf %59, %59 : vector<8x8xf32>
    %62 = arith.addf %60, %61 : vector<8x8xf32>
    %63 = arith.mulf %61, %61 : vector<8x8xf32>
    %64 = arith.addf %62, %63 : vector<8x8xf32>
    %65 = arith.addf %52, %64 : vector<8x8xf32>
    %c4_18 = arith.constant 4 : index
    %66 = memref.load %arg0[%c4_18] : memref<5xf32, #tpu.memory_space<smem>>
    %67 = vector.broadcast %66 : f32 to vector<8x8xf32>
    %68 = arith.mulf %40, %67 : vector<8x8xf32>
    %69 = math.exp %68 : vector<8x8xf32>
    %70 = arith.mulf %69, %69 : vector<8x8xf32>
    %71 = arith.addf %69, %70 : vector<8x8xf32>
    %72 = arith.mulf %70, %70 : vector<8x8xf32>
    %73 = arith.addf %71, %72 : vector<8x8xf32>
    %74 = arith.mulf %72, %72 : vector<8x8xf32>
    %75 = arith.addf %73, %74 : vector<8x8xf32>
    %76 = arith.mulf %74, %74 : vector<8x8xf32>
    %77 = arith.addf %75, %76 : vector<8x8xf32>
    %cst_19 = arith.constant 2.000000e+00 : f32
    %78 = vector.broadcast %cst_19 : f32 to vector<8x8xf32>
    %79 = arith.mulf %78, %77 : vector<8x8xf32>
    %80 = arith.subf %65, %79 : vector<8x8xf32>
    %81 = vector.shape_cast %80 : vector<8x8xf32> to vector<1x8x8xf32>
    %cst_20 = arith.constant dense<0.000000e+00> : vector<1xf32>
    %82 = vector.multi_reduction <add>, %81, %cst_20 [1, 2] : vector<1x8x8xf32> to vector<1xf32>
    %83 = vector.shape_cast %82 : vector<1xf32> to vector<1x1x1xf32>
    %84 = vector.extract %83[0, 0, 0] : f32 from vector<1x1x1xf32>
    %cst_21 = arith.constant 6.400000e+01 : f32
    %85 = arith.divf %84, %cst_21 : f32
    %c0_22 = arith.constant 0 : index
    %86 = memref.load %arg3[%c0_22] : memref<1xf32, #tpu.memory_space<smem>>
    memref.store %85, %arg3[%c0_22] : memref<1xf32, #tpu.memory_space<smem>>
    return
  }
}

</mosaic_0001>

<llo_original>
// kernel: tpu_custom_call.1
$region0: #{tpu_custom_call.1}
  #allocation0 [shape = 'u32[]', space=smem, size = 0x4, offset = 0x4, fixed_abs, tag = 'smem constant byte address 0x4 - core index']
  #allocation1 [shape = 'u32[144,128]{1,0:T(1,128)}', space=vmem, size = 0x12000, scoped, tag = 'internal scratch']
  %s0 = inlined_call_operand.hbm [shape: f32[5], index: 0, kind: input, shape index: {}]
  %s1 = inlined_call_operand.hbm [shape: f32[8,128], index: 1, kind: input, shape index: {}]
  %s2 = inlined_call_operand.hbm [shape: f32[8,128], index: 2, kind: input, shape index: {}]
  %s3 = inlined_call_operand.hbm [shape: f32[1], index: 3, kind: output, shape index: {}]
  %s4 = sld [smem:[#allocation0]]
  $region34: #{tpu_custom_call.1} parent=0
    _
  %s6 = ssub.s32 1, %s4
  %s7 = scalar_select 0, %s6, %s4
  $region1: #{tpu_custom_call.1} parent=0
    #allocation2 [shape = 'u8[512]{0}', space=smem, size = 0x200, scoped, tag = 'input window, operand 0, single buffered']
    #allocation3 [shape = 's32[1]{0}', space=sflag, size = 0x4, scoped, tag = 'scoped memory for tpu_custom_call.1']
    #allocation4 [shape = 's32[1]{0}', space=sflag, size = 0x4, scoped, tag = 'scoped memory for tpu_custom_call.1']
    #allocation5 [shape = 's32[1]{0}', space=sflag, size = 0x4, scoped, tag = 'scoped memory for tpu_custom_call.1']
    #allocation6 [shape = 'u8[4096]{0}', space=vmem, size = 0x1000, scoped, tag = 'input window, operand 1, single buffered']
    #allocation7 [shape = 'u8[4096]{0}', space=vmem, size = 0x1000, scoped, tag = 'input window, operand 2, single buffered']
    #allocation8 [shape = 's32[1]{0}', space=sflag, size = 0x4, scoped, tag = 'scoped memory for tpu_custom_call.1']
    #allocation9 [shape = 'u8[512]{0}', space=smem, size = 0x200, scoped, tag = 'output window, operand 0, single buffered']
    %8 = vsyncpa [#allocation4], 0
    %9 = vsyncpa [#allocation3], 0
    %10 = vsyncpa [#allocation8], 0
    %11 = vsyncpa [#allocation5], 0
    // Predicated region
    $region2: #{tpu_custom_call.1} parent=1 // pred_check
      _
    $region3: #{tpu_custom_call.1} parent=1 // pred_check_branch
      %13 = sbr.rel (0) target = $region5
    $region4: #{tpu_custom_call.1} parent=1 // pred_region
      %s15 = ssub.s32 16, 16
      %16 = vsyncadd [#allocation4], %s15
      %19 = dma.hbm_to_smem %s0, 16, [#allocation2], [#allocation4]
    $region5: #{tpu_custom_call.1} parent=1 // pred_fallthru
      _
    // Predicated region
    $region6: #{tpu_custom_call.1} parent=1 // pred_check
      _
    $region7: #{tpu_custom_call.1} parent=1 // pred_check_branch
      %21 = sbr.rel (0) target = $region9
    $region8: #{tpu_custom_call.1} parent=1 // pred_region
      %s23 = ssub.s32 128, 128
      %24 = vsyncadd [#allocation3], %s23
      %s26 = sshll.u32 [#allocation6], 4
      %s27 = int_to_ptr.vmem [resolvable:$true] %s26
      %29 = dma.hbm_to_vmem [thread:$0]  %s1, 128, %s27, [#allocation3]
    $region9: #{tpu_custom_call.1} parent=1 // pred_fallthru
      _
    // Predicated region
    $region10: #{tpu_custom_call.1} parent=1 // pred_check
      _
    $region11: #{tpu_custom_call.1} parent=1 // pred_check_branch
      %31 = sbr.rel (0) target = $region13
    $region12: #{tpu_custom_call.1} parent=1 // pred_region
      %s33 = ssub.s32 128, 128
      %34 = vsyncadd [#allocation8], %s33
      %s36 = sshll.u32 [#allocation7], 4
      %s37 = int_to_ptr.vmem [resolvable:$true] %s36
      %39 = dma.hbm_to_vmem [thread:$0]  %s2, 128, %s37, [#allocation8]
    $region13: #{tpu_custom_call.1} parent=1 // pred_fallthru
      _
    // Predicated region
    $region14: #{tpu_custom_call.1} parent=1 // pred_check
      _
    $region15: #{tpu_custom_call.1} parent=1 // pred_check_branch
      %41 = sbr.rel (0) target = $region17
    $region16: #{tpu_custom_call.1} parent=1 // pred_region
      %42 = dma.done [#allocation4], 16
    $region17: #{tpu_custom_call.1} parent=1 // pred_fallthru
      _
    // Predicated region
    $region18: #{tpu_custom_call.1} parent=1 // pred_check
      _
    $region19: #{tpu_custom_call.1} parent=1 // pred_check_branch
      %44 = sbr.rel (0) target = $region21
    $region20: #{tpu_custom_call.1} parent=1 // pred_region
      %45 = dma.done [#allocation3], 128
    $region21: #{tpu_custom_call.1} parent=1 // pred_fallthru
      _
    // Predicated region
    $region22: #{tpu_custom_call.1} parent=1 // pred_check
      _
    $region23: #{tpu_custom_call.1} parent=1 // pred_check_branch
      %47 = sbr.rel (0) target = $region25
    $region24: #{tpu_custom_call.1} parent=1 // pred_region
      %48 = dma.done [#allocation8], 128
    $region25: #{tpu_custom_call.1} parent=1 // pred_fallthru
      _
    %49 = sfence
    %v50 = vld [vmem:[#allocation6] sm:$0xff]
    %v51 = vld [vmem:[#allocation7] sm:$0xff]
    %v52 = vmul.f32 %v50, %v50
    %53 = vadd.xlane.f32.xlu0 %v52
    %v54 = vpop.xlane.xlu0 %53
    %v55 = vmul.f32 %v51, %v51
    %56 = vadd.xlane.f32.xlu0 %v55
    %v57 = vpop.xlane.xlu0 %56
    %58 = vmatprep.subr.mxu0 0.0
    %59 = vmatpush1.xpose.msra.mxu0 %v52
    %60 = vmatprep.subr.mxu0 0.0
    %61 = vmatpush1.xpose.msra.mxu0 0.0
    %62 = vmatprep.subr.mxu0 0.0
    %63 = vmatpush1.xpose.msra.mxu0 0.0
    %64 = vmatprep.subr.mxu0 0.0
    %65 = vmatpush1.xpose.msra.mxu0 0.0
    %66 = vmatprep.subr.mxu0 0.0
    %67 = vmatpush1.xpose.msra.mxu0 0.0
    %68 = vmatprep.subr.mxu0 0.0
    %69 = vmatpush1.xpose.msra.mxu0 0.0
    %70 = vmatprep.subr.mxu0 0.0
    %71 = vmatpush1.xpose.msra.mxu0 0.0
    %72 = vmatprep.subr.mxu0 0.0
    %73 = vmatpush1.xpose.msra.mxu0 0.0
    %74 = vmatprep.subr.mxu0 0.0
    %75 = vmatpush1.xpose.msra.mxu0 0.0
    %76 = vmatprep.subr.mxu0 0.0
    %77 = vmatpush1.xpose.msra.mxu0 0.0
    %78 = vmatprep.subr.mxu0 0.0
    %79 = vmatpush1.xpose.msra.mxu0 0.0
    %80 = vmatprep.subr.mxu0 0.0
    %81 = vmatpush1.xpose.msra.mxu0 0.0
    %82 = vmatprep.subr.mxu0 0.0
    %83 = vmatpush1.xpose.msra.mxu0 0.0
    %84 = vmatprep.subr.mxu0 0.0
    %85 = vmatpush1.xpose.msra.mxu0 0.0
    %86 = vmatprep.subr.mxu0 0.0
    %87 = vmatpush1.xpose.msra.mxu0 0.0
    %88 = vmatprep.subr.mxu0 0.0
    %89 = vmatpush1.xpose.msra.mxu0 0.0
    %90 = vmatprep.subr.mxu0 0.0
    %91 = vmatpush1.xpose.msra.mxu0 0.0
    %92 = vmatprep.subr.mxu0 0.0
    %93 = vmatpush1.xpose.msra.mxu0 0.0
    %94 = vmatprep.subr.mxu0 0.0
    %95 = vmatpush1.xpose.msra.mxu0 0.0
    %96 = vmatprep.subr.mxu0 0.0
    %97 = vmatpush1.xpose.msra.mxu0 0.0
    %98 = vmatprep.subr.mxu0 0.0
    %99 = vmatpush1.xpose.msra.mxu0 0.0
    %100 = vmatprep.subr.mxu0 0.0
    %101 = vmatpush1.xpose.msra.mxu0 0.0
    %102 = vmatprep.subr.mxu0 0.0
    %103 = vmatpush1.xpose.msra.mxu0 0.0
    %104 = vmatprep.subr.mxu0 0.0
    %105 = vmatpush1.xpose.msra.mxu0 0.0
    %106 = vmatprep.subr.mxu0 0.0
    %107 = vmatpush1.xpose.msra.mxu0 0.0
    %108 = vmatprep.subr.mxu0 0.0
    %109 = vmatpush1.xpose.msra.mxu0 0.0
    %110 = vmatprep.subr.mxu0 0.0
    %111 = vmatpush1.xpose.msra.mxu0 0.0
    %112 = vmatprep.subr.mxu0 0.0
    %113 = vmatpush1.xpose.msra.mxu0 0.0
    %114 = vmatprep.subr.mxu0 0.0
    %115 = vmatpush1.xpose.msra.mxu0 0.0
    %116 = vmatprep.subr.mxu0 0.0
    %117 = vmatpush1.xpose.msra.mxu0 0.0
    %118 = vmatprep.subr.mxu0 0.0
    %119 = vmatpush1.xpose.msra.mxu0 0.0
    %120 = vmatprep.subr.mxu0 0.0
    %121 = vmatpush1.xpose.msra.mxu0 0.0
    %122 = vmatprep.mubr.f32.mxu0 0.0
    %123 = vmatmul.mubr.f32.gmra.mrb[0].mxu0 1.0
    %v124 = vpop.f32.mrb[0].mxu0
    %v125 = vadd.f32 0.0, %v124
    %v126 = vpop.f32.mrb[0].mxu0
    %127 = vdwg.mxu0
    %128 = vmatprep.subr.mxu0 0.0
    %129 = vmatpush1.xpose.msra.mxu0 %v55
    %130 = vmatprep.subr.mxu0 0.0
    %131 = vmatpush1.xpose.msra.mxu0 0.0
    %132 = vmatprep.subr.mxu0 0.0
    %133 = vmatpush1.xpose.msra.mxu0 0.0
    %134 = vmatprep.subr.mxu0 0.0
    %135 = vmatpush1.xpose.msra.mxu0 0.0
    %136 = vmatprep.subr.mxu0 0.0
    %137 = vmatpush1.xpose.msra.mxu0 0.0
    %138 = vmatprep.subr.mxu0 0.0
    %139 = vmatpush1.xpose.msra.mxu0 0.0
    %140 = vmatprep.subr.mxu0 0.0
    %141 = vmatpush1.xpose.msra.mxu0 0.0
    %142 = vmatprep.subr.mxu0 0.0
    %143 = vmatpush1.xpose.msra.mxu0 0.0
    %144 = vmatprep.subr.mxu0 0.0
    %145 = vmatpush1.xpose.msra.mxu0 0.0
    %146 = vmatprep.subr.mxu0 0.0
    %147 = vmatpush1.xpose.msra.mxu0 0.0
    %148 = vmatprep.subr.mxu0 0.0
    %149 = vmatpush1.xpose.msra.mxu0 0.0
    %150 = vmatprep.subr.mxu0 0.0
    %151 = vmatpush1.xpose.msra.mxu0 0.0
    %152 = vmatprep.subr.mxu0 0.0
    %153 = vmatpush1.xpose.msra.mxu0 0.0
    %154 = vmatprep.subr.mxu0 0.0
    %155 = vmatpush1.xpose.msra.mxu0 0.0
    %156 = vmatprep.subr.mxu0 0.0
    %157 = vmatpush1.xpose.msra.mxu0 0.0
    %158 = vmatprep.subr.mxu0 0.0
    %159 = vmatpush1.xpose.msra.mxu0 0.0
    %160 = vmatprep.subr.mxu0 0.0
    %161 = vmatpush1.xpose.msra.mxu0 0.0
    %162 = vmatprep.subr.mxu0 0.0
    %163 = vmatpush1.xpose.msra.mxu0 0.0
    %164 = vmatprep.subr.mxu0 0.0
    %165 = vmatpush1.xpose.msra.mxu0 0.0
    %166 = vmatprep.subr.mxu0 0.0
    %167 = vmatpush1.xpose.msra.mxu0 0.0
    %168 = vmatprep.subr.mxu0 0.0
    %169 = vmatpush1.xpose.msra.mxu0 0.0
    %170 = vmatprep.subr.mxu0 0.0
    %171 = vmatpush1.xpose.msra.mxu0 0.0
    %172 = vmatprep.subr.mxu0 0.0
    %173 = vmatpush1.xpose.msra.mxu0 0.0
    %174 = vmatprep.subr.mxu0 0.0
    %175 = vmatpush1.xpose.msra.mxu0 0.0
    %176 = vmatprep.subr.mxu0 0.0
    %177 = vmatpush1.xpose.msra.mxu0 0.0
    %178 = vmatprep.subr.mxu0 0.0
    %179 = vmatpush1.xpose.msra.mxu0 0.0
    %180 = vmatprep.subr.mxu0 0.0
    %181 = vmatpush1.xpose.msra.mxu0 0.0
    %182 = vmatprep.subr.mxu0 0.0
    %183 = vmatpush1.xpose.msra.mxu0 0.0
    %184 = vmatprep.subr.mxu0 0.0
    %185 = vmatpush1.xpose.msra.mxu0 0.0
    %186 = vmatprep.subr.mxu0 0.0
    %187 = vmatpush1.xpose.msra.mxu0 0.0
    %188 = vmatprep.subr.mxu0 0.0
    %189 = vmatpush1.xpose.msra.mxu0 0.0
    %190 = vmatprep.subr.mxu0 0.0
    %191 = vmatpush1.xpose.msra.mxu0 0.0
    %192 = vmatprep.mubr.f32.mxu0 0.0
    %193 = vmatmul.mubr.f32.gmra.mrb[0].mxu0 1.0
    %v194 = vpop.f32.mrb[0].mxu0
    %v195 = vadd.f32 0.0, %v194
    %v196 = vpop.f32.mrb[0].mxu0
    %197 = vdwg.mxu0
    %198 = vmatprep.subr.mxu0 0.0
    %199 = vmatpush1.xpose.msra.mxu0 %v50
    %200 = vmatprep.subr.mxu0 0.0
    %201 = vmatpush1.xpose.msra.mxu0 0.0
    %202 = vmatprep.subr.mxu0 0.0
    %203 = vmatpush1.xpose.msra.mxu0 0.0
    %204 = vmatprep.subr.mxu0 0.0
    %205 = vmatpush1.xpose.msra.mxu0 0.0
    %206 = vmatprep.subr.mxu0 0.0
    %207 = vmatpush1.xpose.msra.mxu0 0.0
    %208 = vmatprep.subr.mxu0 0.0
    %209 = vmatpush1.xpose.msra.mxu0 0.0
    %210 = vmatprep.subr.mxu0 0.0
    %211 = vmatpush1.xpose.msra.mxu0 0.0
    %212 = vmatprep.subr.mxu0 0.0
    %213 = vmatpush1.xpose.msra.mxu0 0.0
    %214 = vmatprep.subr.mxu0 0.0
    %215 = vmatpush1.xpose.msra.mxu0 0.0
    %216 = vmatprep.subr.mxu0 0.0
    %217 = vmatpush1.xpose.msra.mxu0 0.0
    %218 = vmatprep.subr.mxu0 0.0
    %219 = vmatpush1.xpose.msra.mxu0 0.0
    %220 = vmatprep.subr.mxu0 0.0
    %221 = vmatpush1.xpose.msra.mxu0 0.0
    %222 = vmatprep.subr.mxu0 0.0
    %223 = vmatpush1.xpose.msra.mxu0 0.0
    %224 = vmatprep.subr.mxu0 0.0
    %225 = vmatpush1.xpose.msra.mxu0 0.0
    %226 = vmatprep.subr.mxu0 0.0
    %227 = vmatpush1.xpose.msra.mxu0 0.0
    %228 = vmatprep.subr.mxu0 0.0
    %229 = vmatpush1.xpose.msra.mxu0 0.0
    %230 = vmatprep.subr.mxu0 0.0
    %231 = vmatpush1.xpose.msra.mxu0 0.0
    %232 = vmatprep.subr.mxu0 0.0
    %233 = vmatpush1.xpose.msra.mxu0 0.0
    %234 = vmatprep.subr.mxu0 0.0
    %235 = vmatpush1.xpose.msra.mxu0 0.0
    %236 = vmatprep.subr.mxu0 0.0
    %237 = vmatpush1.xpose.msra.mxu0 0.0
    %238 = vmatprep.subr.mxu0 0.0
    %239 = vmatpush1.xpose.msra.mxu0 0.0
    %240 = vmatprep.subr.mxu0 0.0
    %241 = vmatpush1.xpose.msra.mxu0 0.0
    %242 = vmatprep.subr.mxu0 0.0
    %243 = vmatpush1.xpose.msra.mxu0 0.0
    %244 = vmatprep.subr.mxu0 0.0
    %245 = vmatpush1.xpose.msra.mxu0 0.0
    %246 = vmatprep.subr.mxu0 0.0
    %247 = vmatpush1.xpose.msra.mxu0 0.0
    %248 = vmatprep.subr.mxu0 0.0
    %249 = vmatpush1.xpose.msra.mxu0 0.0
    %250 = vmatprep.subr.mxu0 0.0
    %251 = vmatpush1.xpose.msra.mxu0 0.0
    %252 = vmatprep.subr.mxu0 0.0
    %253 = vmatpush1.xpose.msra.mxu0 0.0
    %254 = vmatprep.subr.mxu0 0.0
    %255 = vmatpush1.xpose.msra.mxu0 0.0
    %256 = vmatprep.subr.mxu0 0.0
    %257 = vmatpush1.xpose.msra.mxu0 0.0
    %258 = vmatprep.subr.mxu0 0.0
    %259 = vmatpush1.xpose.msra.mxu0 0.0
    %260 = vmatprep.subr.mxu0 0.0
    %261 = vmatpush1.xpose.msra.mxu0 0.0
    %262 = vmatprep.mubr.f32.mxu0 0.0
    %263 = vmatmul.mubr.f32.gmra.mrb[0].mxu0 %v50
    %v264 = vpop.f32.mrb[0].mxu0
    %v265 = vadd.f32 0.0, %v264
    %v266 = vpop.f32.mrb[0].mxu0
    %267 = vdwg.mxu0
    %v268 = vlaneseq
    %v269 = vshrl.u32 %v268, 7
    %v270 = vsub.s32 0, %v269
    %v271 = vrot.slane %v125, %v270
    %v272 = vadd.f32 %v54, %v271
    %v273 = vmul.f32 %v265, 2.0
    %v274 = vsub.f32 %v272, %v273
    %v275 = vmax.f32 %v274, 0.0
    %276 = vmatprep.subr.mxu0 0.0
    %277 = vmatpush1.xpose.msra.mxu0 %v51
    %278 = vmatprep.subr.mxu0 0.0
    %279 = vmatpush1.xpose.msra.mxu0 0.0
    %280 = vmatprep.subr.mxu0 0.0
    %281 = vmatpush1.xpose.msra.mxu0 0.0
    %282 = vmatprep.subr.mxu0 0.0
    %283 = vmatpush1.xpose.msra.mxu0 0.0
    %284 = vmatprep.subr.mxu0 0.0
    %285 = vmatpush1.xpose.msra.mxu0 0.0
    %286 = vmatprep.subr.mxu0 0.0
    %287 = vmatpush1.xpose.msra.mxu0 0.0
    %288 = vmatprep.subr.mxu0 0.0
    %289 = vmatpush1.xpose.msra.mxu0 0.0
    %290 = vmatprep.subr.mxu0 0.0
    %291 = vmatpush1.xpose.msra.mxu0 0.0
    %292 = vmatprep.subr.mxu0 0.0
    %293 = vmatpush1.xpose.msra.mxu0 0.0
    %294 = vmatprep.subr.mxu0 0.0
    %295 = vmatpush1.xpose.msra.mxu0 0.0
    %296 = vmatprep.subr.mxu0 0.0
    %297 = vmatpush1.xpose.msra.mxu0 0.0
    %298 = vmatprep.subr.mxu0 0.0
    %299 = vmatpush1.xpose.msra.mxu0 0.0
    %300 = vmatprep.subr.mxu0 0.0
    %301 = vmatpush1.xpose.msra.mxu0 0.0
    %302 = vmatprep.subr.mxu0 0.0
    %303 = vmatpush1.xpose.msra.mxu0 0.0
    %304 = vmatprep.subr.mxu0 0.0
    %305 = vmatpush1.xpose.msra.mxu0 0.0
    %306 = vmatprep.subr.mxu0 0.0
    %307 = vmatpush1.xpose.msra.mxu0 0.0
    %308 = vmatprep.subr.mxu0 0.0
    %309 = vmatpush1.xpose.msra.mxu0 0.0
    %310 = vmatprep.subr.mxu0 0.0
    %311 = vmatpush1.xpose.msra.mxu0 0.0
    %312 = vmatprep.subr.mxu0 0.0
    %313 = vmatpush1.xpose.msra.mxu0 0.0
    %314 = vmatprep.subr.mxu0 0.0
    %315 = vmatpush1.xpose.msra.mxu0 0.0
    %316 = vmatprep.subr.mxu0 0.0
    %317 = vmatpush1.xpose.msra.mxu0 0.0
    %318 = vmatprep.subr.mxu0 0.0
    %319 = vmatpush1.xpose.msra.mxu0 0.0
    %320 = vmatprep.subr.mxu0 0.0
    %321 = vmatpush1.xpose.msra.mxu0 0.0
    %322 = vmatprep.subr.mxu0 0.0
    %323 = vmatpush1.xpose.msra.mxu0 0.0
    %324 = vmatprep.subr.mxu0 0.0
    %325 = vmatpush1.xpose.msra.mxu0 0.0
    %326 = vmatprep.subr.mxu0 0.0
    %327 = vmatpush1.xpose.msra.mxu0 0.0
    %328 = vmatprep.subr.mxu0 0.0
    %329 = vmatpush1.xpose.msra.mxu0 0.0
    %330 = vmatprep.subr.mxu0 0.0
    %331 = vmatpush1.xpose.msra.mxu0 0.0
    %332 = vmatprep.subr.mxu0 0.0
    %333 = vmatpush1.xpose.msra.mxu0 0.0
    %334 = vmatprep.subr.mxu0 0.0
    %335 = vmatpush1.xpose.msra.mxu0 0.0
    %336 = vmatprep.subr.mxu0 0.0
    %337 = vmatpush1.xpose.msra.mxu0 0.0
    %338 = vmatprep.subr.mxu0 0.0
    %339 = vmatpush1.xpose.msra.mxu0 0.0
    %340 = vmatprep.mubr.f32.mxu0 0.0
    %341 = vmatmul.mubr.f32.gmra.mrb[0].mxu0 %v51
    %v342 = vpop.f32.mrb[0].mxu0
    %v343 = vadd.f32 0.0, %v342
    %v344 = vpop.f32.mrb[0].mxu0
    %345 = vdwg.mxu0
    %v346 = vlaneseq
    %v347 = vshrl.u32 %v346, 7
    %v348 = vsub.s32 0, %v347
    %v349 = vrot.slane %v195, %v348
    %v350 = vadd.f32 %v57, %v349
    %v351 = vmul.f32 %v343, 2.0
    %v352 = vsub.f32 %v350, %v351
    %v353 = vmax.f32 %v352, 0.0
    %354 = vmatprep.subr.mxu0 0.0
    %355 = vmatpush1.xpose.msra.mxu0 %v51
    %356 = vmatprep.subr.mxu0 0.0
    %357 = vmatpush1.xpose.msra.mxu0 0.0
    %358 = vmatprep.subr.mxu0 0.0
    %359 = vmatpush1.xpose.msra.mxu0 0.0
    %360 = vmatprep.subr.mxu0 0.0
    %361 = vmatpush1.xpose.msra.mxu0 0.0
    %362 = vmatprep.subr.mxu0 0.0
    %363 = vmatpush1.xpose.msra.mxu0 0.0
    %364 = vmatprep.subr.mxu0 0.0
    %365 = vmatpush1.xpose.msra.mxu0 0.0
    %366 = vmatprep.subr.mxu0 0.0
    %367 = vmatpush1.xpose.msra.mxu0 0.0
    %368 = vmatprep.subr.mxu0 0.0
    %369 = vmatpush1.xpose.msra.mxu0 0.0
    %370 = vmatprep.subr.mxu0 0.0
    %371 = vmatpush1.xpose.msra.mxu0 0.0
    %372 = vmatprep.subr.mxu0 0.0
    %373 = vmatpush1.xpose.msra.mxu0 0.0
    %374 = vmatprep.subr.mxu0 0.0
    %375 = vmatpush1.xpose.msra.mxu0 0.0
    %376 = vmatprep.subr.mxu0 0.0
    %377 = vmatpush1.xpose.msra.mxu0 0.0
    %378 = vmatprep.subr.mxu0 0.0
    %379 = vmatpush1.xpose.msra.mxu0 0.0
    %380 = vmatprep.subr.mxu0 0.0
    %381 = vmatpush1.xpose.msra.mxu0 0.0
    %382 = vmatprep.subr.mxu0 0.0
    %383 = vmatpush1.xpose.msra.mxu0 0.0
    %384 = vmatprep.subr.mxu0 0.0
    %385 = vmatpush1.xpose.msra.mxu0 0.0
    %386 = vmatprep.subr.mxu0 0.0
    %387 = vmatpush1.xpose.msra.mxu0 0.0
    %388 = vmatprep.subr.mxu0 0.0
    %389 = vmatpush1.xpose.msra.mxu0 0.0
    %390 = vmatprep.subr.mxu0 0.0
    %391 = vmatpush1.xpose.msra.mxu0 0.0
    %392 = vmatprep.subr.mxu0 0.0
    %393 = vmatpush1.xpose.msra.mxu0 0.0
    %394 = vmatprep.subr.mxu0 0.0
    %395 = vmatpush1.xpose.msra.mxu0 0.0
    %396 = vmatprep.subr.mxu0 0.0
    %397 = vmatpush1.xpose.msra.mxu0 0.0
    %398 = vmatprep.subr.mxu0 0.0
    %399 = vmatpush1.xpose.msra.mxu0 0.0
    %400 = vmatprep.subr.mxu0 0.0
    %401 = vmatpush1.xpose.msra.mxu0 0.0
    %402 = vmatprep.subr.mxu0 0.0
    %403 = vmatpush1.xpose.msra.mxu0 0.0
    %404 = vmatprep.subr.mxu0 0.0
    %405 = vmatpush1.xpose.msra.mxu0 0.0
    %406 = vmatprep.subr.mxu0 0.0
    %407 = vmatpush1.xpose.msra.mxu0 0.0
    %408 = vmatprep.subr.mxu0 0.0
    %409 = vmatpush1.xpose.msra.mxu0 0.0
    %410 = vmatprep.subr.mxu0 0.0
    %411 = vmatpush1.xpose.msra.mxu0 0.0
    %412 = vmatprep.subr.mxu0 0.0
    %413 = vmatpush1.xpose.msra.mxu0 0.0
    %414 = vmatprep.subr.mxu0 0.0
    %415 = vmatpush1.xpose.msra.mxu0 0.0
    %416 = vmatprep.subr.mxu0 0.0
    %417 = vmatpush1.xpose.msra.mxu0 0.0
    %418 = vmatprep.mubr.f32.mxu0 0.0
    %419 = vmatmul.mubr.f32.gmra.mrb[0].mxu0 %v50
    %v420 = vpop.f32.mrb[0].mxu0
    %v421 = vadd.f32 0.0, %v420
    %v422 = vpop.f32.mrb[0].mxu0
    %423 = vdwg.mxu0
    %v424 = vadd.f32 %v54, %v349
    %v425 = vmul.f32 %v421, 2.0
    %v426 = vsub.f32 %v424, %v425
    %v427 = vmax.f32 %v426, 0.0
    %s428 = sld [smem:[#allocation2 + $0x4]]
    %v429 = vstv %s428
    %v430 = vmul.f32 %v275, %v429
    %v431 = vmul.f32 %v430, 1.442695
    %v432 = vpow.pop %v431
    %v433 = vmul.f32 %v432, %v432
    %v434 = vadd.f32 %v432, %v433
    %v435 = vmul.f32 %v433, %v433
    %v436 = vadd.f32 %v434, %v435
    %v437 = vmul.f32 %v435, %v435
    %v438 = vadd.f32 %v436, %v437
    %v439 = vmul.f32 %v437, %v437
    %v440 = vadd.f32 %v438, %v439
    %v441 = vmul.f32 %v353, %v429
    %v442 = vmul.f32 %v441, 1.442695
    %v443 = vpow.pop %v442
    %v444 = vmul.f32 %v443, %v443
    %v445 = vadd.f32 %v443, %v444
    %v446 = vmul.f32 %v444, %v444
    %v447 = vadd.f32 %v445, %v446
    %v448 = vmul.f32 %v446, %v446
    %v449 = vadd.f32 %v447, %v448
    %v450 = vmul.f32 %v448, %v448
    %v451 = vadd.f32 %v449, %v450
    %v452 = vadd.f32 %v440, %v451
    %v453 = vmul.f32 %v427, %v429
    %v454 = vmul.f32 %v453, 1.442695
    %v455 = vpow.pop %v454
    %v456 = vmul.f32 %v455, %v455
    %v457 = vadd.f32 %v455, %v456
    %v458 = vmul.f32 %v456, %v456
    %v459 = vadd.f32 %v457, %v458
    %v460 = vmul.f32 %v458, %v458
    %v461 = vadd.f32 %v459, %v460
    %v462 = vmul.f32 %v460, %v460
    %v463 = vadd.f32 %v461, %v462
    %v464 = vmul.f32 %v463, 2.0
    %v465 = vsub.f32 %v452, %v464
    %vm466 = vcmask 64512
    %v467 = vsel %vm466, %v465, 0.0
    %468 = vadd.xlane.f32.xlu0 %v467
    %v469 = vpop.xlane.xlu0 %468
    %v470 = vrot.slane %v469, 4
    %v471 = vadd.f32 %v469, %v470
    %v472 = vrot.slane %v471, 2
    %v473 = vadd.f32 %v471, %v472
    %v474 = vrot.slane %v473, 1
    %v475 = vadd.f32 %v473, %v474
    %s476 = vtos %v475
    %v477 = vrcp.pop 64.0
    %s478 = vtos %v477
    %s479 = smul.f32 %s476, %s478
    %s480 = scalar_lea.smem [#allocation9], 0
    %481 = sst [smem:[%s480]] %s479
    // Predicated region
    $region26: #{tpu_custom_call.1} parent=1 // pred_check
      _
    $region27: #{tpu_custom_call.1} parent=1 // pred_check_branch
      %483 = sbr.rel (0) target = $region29
    $region28: #{tpu_custom_call.1} parent=1 // pred_region
      %s485 = ssub.s32 16, 16
      %486 = vsyncadd [#allocation5], %s485
      %489 = dma.smem_to_hbm [#allocation9], 16, %s3, [#allocation5]
    $region29: #{tpu_custom_call.1} parent=1 // pred_fallthru
      _
    // Predicated region
    $region30: #{tpu_custom_call.1} parent=1 // pred_check
      _
    $region31: #{tpu_custom_call.1} parent=1 // pred_check_branch
      %491 = sbr.rel (0) target = $region33
    $region32: #{tpu_custom_call.1} parent=1 // pred_region
      %492 = dma.done [#allocation5], 16
    $region33: #{tpu_custom_call.1} parent=1 // pred_fallthru
      _
    %493 = sfence
    %494 = vsyncpa [#allocation3], 1
    %495 = vsyncpa [#allocation8], 1
    %496 = vsyncpa [#allocation4], 1
    %497 = vsyncpa [#allocation5], 1

</llo_original>
